<compile_context>
chip_gen: v6e
topology: v6e:2x2x1
jax: 0.10.0
libtpu: 0.0.40
codegen_flags: <defaults>
</compile_context>

<pallas_src>
import functools

import jax
import jax.numpy as jnp
from jax.experimental import pallas as pl
from jax.experimental.pallas import tpu as pltpu

LANE = 128
MAX_TILE_B = 2048   # per-step overhead amortized; tiny vs. scoped VMEM limits


def _round_up(n, m):
    return ((n + m - 1) // m) * m


def _num_tensorcores():
    """Best-effort TensorCores-per-device: 2 on v7x and megacore v4/v5p, else 1."""
    try:
        kind = jax.devices()[0].device_kind.lower()
    except Exception:  # pragma: no cover - defensive; default to single core
        return 1
    return 2 if any(tag in kind for tag in ("v7", "v5p", "v4")) else 1


def mlp_kernel(x_ref, w1_ref, w2_ref, w3_ref, w4_ref, b_ref, o_ref,
               *, sizes, offsets):
    """Whole 4-layer forward for one batch tile; intermediates stay on-chip."""
    n1, n2, n3, n4 = sizes      # lane-padded output widths of fc1..fc4
    o1, o2, o3, o4 = offsets    # lane-aligned offsets into the packed bias
    f32, bf16 = jnp.float32, jnp.bfloat16

    # fc1 + ReLU  (bf16 operands on MXU, f32 accumulate, f32 elementwise)
    h = jnp.dot(x_ref[...].astype(bf16), w1_ref[...], preferred_element_type=f32)
    h = jnp.maximum(h + b_ref[:, o1:o1 + n1], 0.0)

    # fc2 + ReLU
    h = jnp.dot(h.astype(bf16), w2_ref[...], preferred_element_type=f32)
    h = jnp.maximum(h + b_ref[:, o2:o2 + n2], 0.0)

    # fc3 + ReLU
    h = jnp.dot(h.astype(bf16), w3_ref[...], preferred_element_type=f32)
    h = jnp.maximum(h + b_ref[:, o3:o3 + n3], 0.0)

    # fc4 + Sigmoid (lane-padded output -> unmasked, lane-dense stores)
    h = jnp.dot(h.astype(bf16), w4_ref[...], preferred_element_type=f32)
    h = h + b_ref[:, o4:o4 + n4]
    # Exact sigmoid (exp on EUP; the divide is negligible here).
    o_ref[...] = pl.reciprocal(1.0 + jnp.exp(-h), approx=False).astype(o_ref.dtype)


@functools.partial(jax.jit, static_argnames=("tile_b",))
def neural_net_forward(x, params, tile_b=None):
    (w1, b1, w2, b2, w3, b3, w4, b4) = params
    batch, in_size = x.shape
    h1, h2, h3 = w1.shape[1], w2.shape[1], w3.shape[1]
    out_size = w4.shape[1]

    # --- lane-pad every layer width to a multiple of 128 (zero pad = exact) --
    h1p = _round_up(h1, LANE)
    h2p = _round_up(h2, LANE)
    h3p = _round_up(h3, LANE)
    out_pad = _round_up(out_size, LANE)

    w1p = jnp.pad(w1, ((0, 0), (0, h1p - h1)))
    b1p = jnp.pad(b1, ((0, 0), (0, h1p - h1)))
    w2p = jnp.pad(w2, ((0, h1p - h1), (0, h2p - h2)))
    b2p = jnp.pad(b2, ((0, 0), (0, h2p - h2)))
    w3p = jnp.pad(w3, ((0, h2p - h2), (0, h3p - h3)))
    b3p = jnp.pad(b3, ((0, 0), (0, h3p - h3)))
    w4p = jnp.pad(w4, ((0, h3p - h3), (0, out_pad - out_size)))
    b4p = jnp.pad(b4, ((0, 0), (0, out_pad - out_size)))

    # Pack the four (already lane-aligned) biases into one array: single DMA.
    widths = (h1p, h2p, h3p, out_pad)
    offsets = tuple(int(sum(widths[:i])) for i in range(4))
    total = int(sum(widths))
    b_packed = jnp.concatenate(
        [b.astype(jnp.float32) for b in (b1p, b2p, b3p, b4p)], axis=1)

    # --- batch tiling: fewest grid steps that keep every TensorCore busy -----
    batch8 = _round_up(batch, 8)
    if tile_b is None:
        n_cores = _num_tensorcores()
        steps = max(n_cores, pl.cdiv(batch8, MAX_TILE_B))
        steps = _round_up(steps, n_cores)              # even split across TCs
        tile_b = _round_up(-(-batch8 // steps), 8)
    else:
        tile_b = _round_up(max(int(tile_b), 8), 8)     # (8,128) sublane rule
    tile_b = min(tile_b, batch8)
    padded_batch = _round_up(batch8, tile_b)
    xp = x if padded_batch == batch else jnp.pad(
        x, ((0, padded_batch - batch), (0, 0)))
    grid = (padded_batch // tile_b,)

    pinned = lambda i: (0, 0)   # weights / bias: constant block -> VMEM-resident

    kernel = functools.partial(mlp_kernel, sizes=widths, offsets=offsets)

    out = pl.pallas_call(
        kernel,
        out_shape=jax.ShapeDtypeStruct((padded_batch, out_pad), jnp.float32),
        grid=grid,
        in_specs=[
            pl.BlockSpec((tile_b, in_size), lambda i: (i, 0)),   # x: streamed
            pl.BlockSpec((in_size, h1p), pinned),
            pl.BlockSpec((h1p, h2p), pinned),
            pl.BlockSpec((h2p, h3p), pinned),
            pl.BlockSpec((h3p, out_pad), pinned),
            pl.BlockSpec((1, total), pinned),
        ],
        out_specs=pl.BlockSpec((tile_b, out_pad), lambda i: (i, 0)),
        compiler_params=pltpu.CompilerParams(
            dimension_semantics=("parallel",),   # cross-TC sharding on dual-TC parts
        ),
    )(xp, w1p, w2p, w3p, w4p, b_packed)

    return out[:batch, :out_size]


def init_linear(key, in_features, out_features):
    """PyTorch nn.Linear-style init: U(-1/sqrt(in), 1/sqrt(in)).

    Weight stored transposed as (in_features, out_features) in bfloat16
    (MXU-friendly); bias kept 2-D (1, out_features) in f32.
    """
    kw, kb = jax.random.split(key)
    bound = 1.0 / jnp.sqrt(jnp.float32(in_features))
    w = jax.random.uniform(kw, (in_features, out_features), jnp.float32,
                           minval=-bound, maxval=bound).astype(jnp.bfloat16)
    b = jax.random.uniform(kb, (1, out_features), jnp.float32,
                           minval=-bound, maxval=bound)
    return w, b


def init_params(key, input_size, hidden_size, output_size):
    k1, k2, k3, k4 = jax.random.split(key, 4)
    w1, b1 = init_linear(k1, input_size, hidden_size)
    w2, b2 = init_linear(k2, hidden_size, 128)
    w3, b3 = init_linear(k3, 128, hidden_size)
    w4, b4 = init_linear(k4, hidden_size, output_size)
    return (w1, b1, w2, b2, w3, b3, w4, b4)


def reference_forward(x, params):
    """Pure-JAX reference in f32 (bf16 weights cast back exactly)."""
    (w1, b1, w2, b2, w3, b3, w4, b4) = params
    f32 = jnp.float32
    h = jnp.maximum(x @ w1.astype(f32) + b1, 0.0)
    h = jnp.maximum(h @ w2.astype(f32) + b2, 0.0)
    h = jnp.maximum(h @ w3.astype(f32) + b3, 0.0)
    return jax.nn.sigmoid(h @ w4.astype(f32) + b4)


if __name__ == "__main__":
    key = jax.random.PRNGKey(0)
    k_params, k_x = jax.random.split(key)

    # Small shapes consistent with the module spec.
    batch, input_size, hidden_size, output_size = 64, 32, 64, 16
    params = init_params(k_params, input_size, hidden_size, output_size)
    x = jax.random.normal(k_x, (batch, input_size), jnp.float32)

    out = neural_net_forward(x, params)
    jax.block_until_ready(out)

    ref = reference_forward(x, params)
    assert out.shape == (batch, output_size)
    # bf16 activations/weights on the MXU -> slightly loose tolerance.
    assert jnp.allclose(out, ref, atol=2e-2, rtol=2e-2), (
        float(jnp.max(jnp.abs(out - ref))))

    print("KERNEL_OK")
</pallas_src>

<mosaic_0001>
module attributes {stable_mosaic.version = 11 : i64} {
  func.func @mlp_kernel(%arg0: i32, %arg1: memref<64x32xf32, #tpu.memory_space<vmem>>, %arg2: memref<32x128xbf16, #tpu.memory_space<vmem>>, %arg3: memref<128x128xbf16, #tpu.memory_space<vmem>>, %arg4: memref<128x128xbf16, #tpu.memory_space<vmem>>, %arg5: memref<128x128xbf16, #tpu.memory_space<vmem>>, %arg6: memref<1x512xf32, #tpu.memory_space<vmem>>, %arg7: memref<64x128xf32, #tpu.memory_space<vmem>>) attributes {dimension_semantics = [#tpu.dimension_semantics<parallel>], iteration_bounds = array<i64: 1>, scalar_prefetch = 0 : i64, scratch_operands = 0 : i64, tpu.core_type = #tpu.core_type<tc>, window_params = [{transform_indices = @transform_0, window_bounds = array<i64: 64, 32>}, {pipeline_mode = #tpu.pipeline_mode<synchronous>, transform_indices = @transform_1, window_bounds = array<i64: 32, 128>}, {pipeline_mode = #tpu.pipeline_mode<synchronous>, transform_indices = @transform_2, window_bounds = array<i64: 128, 128>}, {pipeline_mode = #tpu.pipeline_mode<synchronous>, transform_indices = @transform_3, window_bounds = array<i64: 128, 128>}, {pipeline_mode = #tpu.pipeline_mode<synchronous>, transform_indices = @transform_4, window_bounds = array<i64: 128, 128>}, {pipeline_mode = #tpu.pipeline_mode<synchronous>, transform_indices = @transform_5, window_bounds = array<i64: 1, 512>}, {transform_indices = @transform_6, window_bounds = array<i64: 64, 128>}]} {
    %c0 = arith.constant 0 : index
    %c0_0 = arith.constant 0 : index
    %0 = vector.load %arg1[%c0, %c0_0] : memref<64x32xf32, #tpu.memory_space<vmem>>, vector<64x32xf32>
    %1 = arith.truncf %0 : vector<64x32xf32> to vector<64x32xbf16>
    %c0_1 = arith.constant 0 : index
    %c0_2 = arith.constant 0 : index
    %2 = vector.load %arg2[%c0_1, %c0_2] : memref<32x128xbf16, #tpu.memory_space<vmem>>, vector<32x128xbf16>
    %cst = arith.constant dense<0.000000e+00> : vector<64x128xf32>
    %3 = tpu.matmul %1, %2, %cst {dimension_numbers = #tpu.dot_dimension_numbers<[1], [0], [0], [1], [0, 0, 1, 1], [], []>} : vector<64x32xbf16>, vector<32x128xbf16>, vector<64x128xf32> -> vector<64x128xf32>
    %c0_3 = arith.constant 0 : index
    %c0_4 = arith.constant 0 : index
    %4 = vector.load %arg6[%c0_3, %c0_4] : memref<1x512xf32, #tpu.memory_space<vmem>>, vector<1x128xf32>
    %5 = vector.broadcast %4 : vector<1x128xf32> to vector<64x128xf32>
    %6 = arith.addf %3, %5 : vector<64x128xf32>
    %cst_5 = arith.constant 0.000000e+00 : f32
    %7 = vector.broadcast %cst_5 : f32 to vector<64x128xf32>
    %8 = arith.maximumf %6, %7 : vector<64x128xf32>
    %9 = arith.truncf %8 : vector<64x128xf32> to vector<64x128xbf16>
    %c0_6 = arith.constant 0 : index
    %c0_7 = arith.constant 0 : index
    %10 = vector.load %arg3[%c0_6, %c0_7] : memref<128x128xbf16, #tpu.memory_space<vmem>>, vector<128x128xbf16>
    %cst_8 = arith.constant dense<0.000000e+00> : vector<64x128xf32>
    %11 = tpu.matmul %9, %10, %cst_8 {dimension_numbers = #tpu.dot_dimension_numbers<[1], [0], [0], [1], [0, 0, 1, 1], [], []>} : vector<64x128xbf16>, vector<128x128xbf16>, vector<64x128xf32> -> vector<64x128xf32>
    %c0_9 = arith.constant 0 : index
    %c128 = arith.constant 128 : index
    %12 = vector.load %arg6[%c0_9, %c128] : memref<1x512xf32, #tpu.memory_space<vmem>>, vector<1x128xf32>
    %13 = vector.broadcast %12 : vector<1x128xf32> to vector<64x128xf32>
    %14 = arith.addf %11, %13 : vector<64x128xf32>
    %cst_10 = arith.constant 0.000000e+00 : f32
    %15 = vector.broadcast %cst_10 : f32 to vector<64x128xf32>
    %16 = arith.maximumf %14, %15 : vector<64x128xf32>
    %17 = arith.truncf %16 : vector<64x128xf32> to vector<64x128xbf16>
    %c0_11 = arith.constant 0 : index
    %c0_12 = arith.constant 0 : index
    %18 = vector.load %arg4[%c0_11, %c0_12] : memref<128x128xbf16, #tpu.memory_space<vmem>>, vector<128x128xbf16>
    %cst_13 = arith.constant dense<0.000000e+00> : vector<64x128xf32>
    %19 = tpu.matmul %17, %18, %cst_13 {dimension_numbers = #tpu.dot_dimension_numbers<[1], [0], [0], [1], [0, 0, 1, 1], [], []>} : vector<64x128xbf16>, vector<128x128xbf16>, vector<64x128xf32> -> vector<64x128xf32>
    %c0_14 = arith.constant 0 : index
    %c256 = arith.constant 256 : index
    %20 = vector.load %arg6[%c0_14, %c256] : memref<1x512xf32, #tpu.memory_space<vmem>>, vector<1x128xf32>
    %21 = vector.broadcast %20 : vector<1x128xf32> to vector<64x128xf32>
    %22 = arith.addf %19, %21 : vector<64x128xf32>
    %cst_15 = arith.constant 0.000000e+00 : f32
    %23 = vector.broadcast %cst_15 : f32 to vector<64x128xf32>
    %24 = arith.maximumf %22, %23 : vector<64x128xf32>
    %25 = arith.truncf %24 : vector<64x128xf32> to vector<64x128xbf16>
    %c0_16 = arith.constant 0 : index
    %c0_17 = arith.constant 0 : index
    %26 = vector.load %arg5[%c0_16, %c0_17] : memref<128x128xbf16, #tpu.memory_space<vmem>>, vector<128x128xbf16>
    %cst_18 = arith.constant dense<0.000000e+00> : vector<64x128xf32>
    %27 = tpu.matmul %25, %26, %cst_18 {dimension_numbers = #tpu.dot_dimension_numbers<[1], [0], [0], [1], [0, 0, 1, 1], [], []>} : vector<64x128xbf16>, vector<128x128xbf16>, vector<64x128xf32> -> vector<64x128xf32>
    %c0_19 = arith.constant 0 : index
    %c384 = arith.constant 384 : index
    %28 = vector.load %arg6[%c0_19, %c384] : memref<1x512xf32, #tpu.memory_space<vmem>>, vector<1x128xf32>
    %29 = vector.broadcast %28 : vector<1x128xf32> to vector<64x128xf32>
    %30 = arith.addf %27, %29 : vector<64x128xf32>
    %cst_20 = arith.constant 0.000000e+00 : f32
    %31 = vector.broadcast %cst_20 : f32 to vector<64x128xf32>
    %32 = arith.subf %31, %30 : vector<64x128xf32>
    %33 = math.exp %32 : vector<64x128xf32>
    %cst_21 = arith.constant 1.000000e+00 : f32
    %34 = vector.broadcast %cst_21 : f32 to vector<64x128xf32>
    %35 = arith.addf %34, %33 : vector<64x128xf32>
    %36 = tpu.reciprocal %35 : vector<64x128xf32> -> vector<64x128xf32>
    %c0_22 = arith.constant 0 : index
    %c0_23 = arith.constant 0 : index
    %37 = vector.load %arg7[%c0_22, %c0_23] : memref<64x128xf32, #tpu.memory_space<vmem>>, vector<64x128xf32>
    tpu.vector_store %arg7[%c0_22, %c0_23], %36 {strides = array<i32>} : memref<64x128xf32, #tpu.memory_space<vmem>>, vector<64x128xf32>,
    return
  }
  func.func @transform_0(%arg0: i32) -> (i32, i32) {
    %c0_i32 = arith.constant 0 : i32
    %c0_i32_0 = arith.constant 0 : i32
    return %arg0, %c0_i32 : i32, i32
  }
  func.func @transform_1(%arg0: i32) -> (i32, i32) {
    %c0_i32 = arith.constant 0 : i32
    %c0_i32_0 = arith.constant 0 : i32
    %c0_i32_1 = arith.constant 0 : i32
    return %c0_i32, %c0_i32_0 : i32, i32
  }
  func.func @transform_2(%arg0: i32) -> (i32, i32) {
    %c0_i32 = arith.constant 0 : i32
    %c0_i32_0 = arith.constant 0 : i32
    %c0_i32_1 = arith.constant 0 : i32
    return %c0_i32, %c0_i32_0 : i32, i32
  }
  func.func @transform_3(%arg0: i32) -> (i32, i32) {
    %c0_i32 = arith.constant 0 : i32
    %c0_i32_0 = arith.constant 0 : i32
    %c0_i32_1 = arith.constant 0 : i32
    return %c0_i32, %c0_i32_0 : i32, i32
  }
  func.func @transform_4(%arg0: i32) -> (i32, i32) {
    %c0_i32 = arith.constant 0 : i32
    %c0_i32_0 = arith.constant 0 : i32
    %c0_i32_1 = arith.constant 0 : i32
    return %c0_i32, %c0_i32_0 : i32, i32
  }
  func.func @transform_5(%arg0: i32) -> (i32, i32) {
    %c0_i32 = arith.constant 0 : i32
    %c0_i32_0 = arith.constant 0 : i32
    %c0_i32_1 = arith.constant 0 : i32
    return %c0_i32, %c0_i32_0 : i32, i32
  }
  func.func @transform_6(%arg0: i32) -> (i32, i32) {
    %c0_i32 = arith.constant 0 : i32
    %c0_i32_0 = arith.constant 0 : i32
    return %arg0, %c0_i32 : i32, i32
  }
}

</mosaic_0001>

<llo_original>
// kernel: neural_net_forward.1
$region0: #{neural_net_forward.1}
  #allocation0 [shape = 'u32[]', space=smem, size = 0x4, offset = 0x4, fixed_abs, tag = 'smem constant byte address 0x4 - core index']
  #allocation1 [shape = 'u32[144,128]{1,0:T(1,128)}', space=vmem, size = 0x12000, scoped, tag = 'internal scratch']
  %s0 = inlined_call_operand.vmem [shape: f32[64,32], index: 0, kind: input, shape index: {}]
  %s1 = inlined_call_operand.vmem [shape: bf16[32,128], index: 1, kind: input, shape index: {}]
  %s2 = inlined_call_operand.vmem [shape: bf16[128,128], index: 2, kind: input, shape index: {}]
  %s3 = inlined_call_operand.vmem [shape: bf16[128,128], index: 3, kind: input, shape index: {}]
  %s4 = inlined_call_operand.vmem [shape: bf16[128,128], index: 4, kind: input, shape index: {}]
  %s5 = inlined_call_operand.vmem [shape: f32[1,512], index: 5, kind: input, shape index: {}]
  %s6 = inlined_call_operand.vmem [shape: f32[64,128], index: 6, kind: output, shape index: {}]
  %s7 = sld [smem:[#allocation0]]
  $region34: #{neural_net_forward.1} parent=0
    _
  %s9 = ssub.s32 1, %s7
  %s10 = scalar_select 0, %s9, %s7
  // Predicated region
  $region2: #{neural_net_forward.1} parent=0 // pred_check
    _
  $region3: #{neural_net_forward.1} parent=0 // pred_check_branch
    %12 = sbr.rel (0) target = $region5
  $region4: #{neural_net_forward.1} parent=0 // pred_region
    _
  $region5: #{neural_net_forward.1} parent=0 // pred_fallthru
    _
  // Predicated region
  $region6: #{neural_net_forward.1} parent=0 // pred_check
    _
  $region7: #{neural_net_forward.1} parent=0 // pred_check_branch
    %14 = sbr.rel (0) target = $region9
  $region8: #{neural_net_forward.1} parent=0 // pred_region
    _
  $region9: #{neural_net_forward.1} parent=0 // pred_fallthru
    _
  // Predicated region
  $region10: #{neural_net_forward.1} parent=0 // pred_check
    _
  $region11: #{neural_net_forward.1} parent=0 // pred_check_branch
    %16 = sbr.rel (0) target = $region13
  $region12: #{neural_net_forward.1} parent=0 // pred_region
    _
  $region13: #{neural_net_forward.1} parent=0 // pred_fallthru
    _
  // Predicated region
  $region14: #{neural_net_forward.1} parent=0 // pred_check
    _
  $region15: #{neural_net_forward.1} parent=0 // pred_check_branch
    %18 = sbr.rel (0) target = $region17
  $region16: #{neural_net_forward.1} parent=0 // pred_region
    _
  $region17: #{neural_net_forward.1} parent=0 // pred_fallthru
    _
  // Predicated region
  $region18: #{neural_net_forward.1} parent=0 // pred_check
    _
  $region19: #{neural_net_forward.1} parent=0 // pred_check_branch
    %20 = sbr.rel (0) target = $region21
  $region20: #{neural_net_forward.1} parent=0 // pred_region
    _
  $region21: #{neural_net_forward.1} parent=0 // pred_fallthru
    _
  // Predicated region
  $region22: #{neural_net_forward.1} parent=0 // pred_check
    _
  $region23: #{neural_net_forward.1} parent=0 // pred_check_branch
    %22 = sbr.rel (0) target = $region25
  $region24: #{neural_net_forward.1} parent=0 // pred_region
    _
  $region25: #{neural_net_forward.1} parent=0 // pred_fallthru
    _
  %v24 = vld [vmem:[%s0] sm:$0xff]
  %v25 = vld [vmem:[%s0 + $0x8] sm:$0xff]
  %v26 = vld [vmem:[%s0 + $0x10] sm:$0xff]
  %v27 = vld [vmem:[%s0 + $0x18] sm:$0xff]
  %v28 = vld [vmem:[%s0 + $0x20] sm:$0xff]
  %v29 = vld [vmem:[%s0 + $0x28] sm:$0xff]
  %v30 = vld [vmem:[%s0 + $0x30] sm:$0xff]
  %v31 = vld [vmem:[%s0 + $0x38] sm:$0xff]
  %v32 = vpack.c.bf16 %v25, %v24
  %v33 = vpack.c.bf16 %v27, %v26
  %v34 = vpack.c.bf16 %v29, %v28
  %v35 = vpack.c.bf16 %v31, %v30
  %v36 = vld [vmem:[%s1] sm:$0xf]
  %v37 = vld [vmem:[%s1 + $0x4] sm:$0xf]
  %v38 = vld [vmem:[%s1 + $0x8] sm:$0xf]
  %v39 = vld [vmem:[%s1 + $0xc] sm:$0xf]
  %v40 = vld [vmem:[%s5] sm:$0x1]
  %v42 = vlaneseq
  %v43 = vshrl.u32 %v42, 7
  %v44 = vsub.s32 0, %v43
  %v45 = vrot.slane %v40, %v44
  %v51 = vunpack.c.l.b16 %v36
  %v52 = vunpack.c.l.b16 %v37
  %v53 = vunpack.c.l.b16 %v38
  %v54 = vunpack.c.l.b16 %v39
  %v55 = vpack.c.b16 %v52, %v51
  %v56 = vpack.c.b16 %v54, %v53
  %vm59 = vcmask 261120
  %v61 = vsel %vm59, %v32, 0
  %v64 = vsel %vm59, %v33, 0
  %v67 = vsel %vm59, %v34, 0
  %v70 = vsel %vm59, %v35, 0
  %72 = vmatprep.subr.bf16.mxu0 0
  %73 = vmatpush1.bf16.msra.mxu0 0
  %74 = vmatprep.subr.bf16.mxu0 0
  %75 = vmatpush1.bf16.msra.mxu0 0
  %76 = vmatprep.subr.bf16.mxu0 0
  %77 = vmatpush1.bf16.msra.mxu0 0
  %78 = vmatprep.subr.bf16.mxu0 0
  %79 = vmatpush1.bf16.msra.mxu0 0
  %80 = vmatprep.subr.bf16.mxu0 0
  %81 = vmatpush1.bf16.msra.mxu0 0
  %82 = vmatprep.subr.bf16.mxu0 0
  %83 = vmatpush1.bf16.msra.mxu0 0
  %84 = vmatprep.subr.bf16.mxu0 0
  %85 = vmatpush1.bf16.msra.mxu0 %v56
  %86 = vmatprep.subr.bf16.mxu0 0
  %87 = vmatpush1.bf16.msra.mxu0 %v55
  %88 = vmatprep.subr.bf16.mxu0 0
  %89 = vmatpush2.bf16.msra.mxu0 0
  %90 = vmatprep.subr.bf16.mxu0 0
  %91 = vmatpush2.bf16.msra.mxu0 0
  %92 = vmatprep.subr.bf16.mxu0 0
  %93 = vmatpush2.bf16.msra.mxu0 0
  %94 = vmatprep.subr.bf16.mxu0 0
  %95 = vmatpush2.bf16.msra.mxu0 0
  %96 = vmatprep.subr.bf16.mxu0 0
  %97 = vmatpush2.bf16.msra.mxu0 0
  %98 = vmatprep.subr.bf16.mxu0 0
  %99 = vmatpush2.bf16.msra.mxu0 0
  %100 = vmatprep.subr.bf16.mxu0 0
  %101 = vmatpush2.bf16.msra.mxu0 0
  %102 = vmatprep.subr.bf16.mxu0 0
  %103 = vmatpush2.bf16.msra.mxu0 0
  %104 = vmatprep.mubr.bf16.mxu0 0
  %105 = vmatmul.mubr.bf16.gmra.mxu0 %v61
  %v106 = vpop.f32.mrf.mxu0
  %v107 = vadd.f32 %v45, %v106
  %v108 = vpop.f32.mrf.mxu0
  %v109 = vpop.f32.mrf.mxu0
  %v110 = vadd.f32 %v45, %v109
  %v111 = vpop.f32.mrf.mxu0
  %112 = vmatprep.mubr.bf16.mxu0 0
  %113 = vmatmul.mubr.bf16.gmra.mxu0 %v64
  %v114 = vpop.f32.mrf.mxu0
  %v115 = vadd.f32 %v45, %v114
  %v116 = vpop.f32.mrf.mxu0
  %v117 = vpop.f32.mrf.mxu0
  %v118 = vadd.f32 %v45, %v117
  %v119 = vpop.f32.mrf.mxu0
  %120 = vmatprep.mubr.bf16.mxu0 0
  %121 = vmatmul.mubr.bf16.gmra.mxu0 %v67
  %v122 = vpop.f32.mrf.mxu0
  %v123 = vadd.f32 %v45, %v122
  %v124 = vpop.f32.mrf.mxu0
  %v125 = vpop.f32.mrf.mxu0
  %v126 = vadd.f32 %v45, %v125
  %v127 = vpop.f32.mrf.mxu0
  %128 = vmatprep.mubr.bf16.mxu0 0
  %129 = vmatmul.mubr.bf16.gmra.mxu0 %v70
  %v130 = vpop.f32.mrf.mxu0
  %v131 = vadd.f32 %v45, %v130
  %v132 = vpop.f32.mrf.mxu0
  %v133 = vpop.f32.mrf.mxu0
  %v134 = vadd.f32 %v45, %v133
  %v135 = vpop.f32.mrf.mxu0
  %136 = vdwg.mxu0
  %v137 = vmax.f32 %v107, 0.0
  %v138 = vmax.f32 %v110, 0.0
  %v139 = vmax.f32 %v115, 0.0
  %v140 = vmax.f32 %v118, 0.0
  %v141 = vmax.f32 %v123, 0.0
  %v142 = vmax.f32 %v126, 0.0
  %v143 = vmax.f32 %v131, 0.0
  %v144 = vmax.f32 %v134, 0.0
  %v145 = vpack.c.bf16 %v138, %v137
  %v146 = vpack.c.bf16 %v140, %v139
  %v147 = vpack.c.bf16 %v142, %v141
  %v148 = vpack.c.bf16 %v144, %v143
  %v149 = vld [vmem:[%s2] sm:$0xf]
  %v150 = vld [vmem:[%s2 + $0x4] sm:$0xf]
  %v151 = vld [vmem:[%s2 + $0x8] sm:$0xf]
  %v152 = vld [vmem:[%s2 + $0xc] sm:$0xf]
  %v153 = vld [vmem:[%s2 + $0x10] sm:$0xf]
  %v154 = vld [vmem:[%s2 + $0x14] sm:$0xf]
  %v155 = vld [vmem:[%s2 + $0x18] sm:$0xf]
  %v156 = vld [vmem:[%s2 + $0x1c] sm:$0xf]
  %v157 = vld [vmem:[%s2 + $0x20] sm:$0xf]
  %v158 = vld [vmem:[%s2 + $0x24] sm:$0xf]
  %v159 = vld [vmem:[%s2 + $0x28] sm:$0xf]
  %v160 = vld [vmem:[%s2 + $0x2c] sm:$0xf]
  %v161 = vld [vmem:[%s2 + $0x30] sm:$0xf]
  %v162 = vld [vmem:[%s2 + $0x34] sm:$0xf]
  %v163 = vld [vmem:[%s2 + $0x38] sm:$0xf]
  %v164 = vld [vmem:[%s2 + $0x3c] sm:$0xf]
  %v165 = vld [vmem:[%s5 + $0x1] sm:$0x1]
  %v167 = vlaneseq
  %v168 = vshrl.u32 %v167, 7
  %v169 = vsub.s32 0, %v168
  %v170 = vrot.slane %v165, %v169
  %v188 = vunpack.c.l.b16 %v149
  %v189 = vunpack.c.l.b16 %v150
  %v190 = vunpack.c.l.b16 %v151
  %v191 = vunpack.c.l.b16 %v152
  %v192 = vunpack.c.l.b16 %v153
  %v193 = vunpack.c.l.b16 %v154
  %v194 = vunpack.c.l.b16 %v155
  %v195 = vunpack.c.l.b16 %v156
  %v196 = vunpack.c.l.b16 %v157
  %v197 = vunpack.c.l.b16 %v158
  %v198 = vunpack.c.l.b16 %v159
  %v199 = vunpack.c.l.b16 %v160
  %v200 = vunpack.c.l.b16 %v161
  %v201 = vunpack.c.l.b16 %v162
  %v202 = vunpack.c.l.b16 %v163
  %v203 = vunpack.c.l.b16 %v164
  %v204 = vpack.c.b16 %v189, %v188
  %v205 = vpack.c.b16 %v191, %v190
  %v206 = vpack.c.b16 %v193, %v192
  %v207 = vpack.c.b16 %v195, %v194
  %v208 = vpack.c.b16 %v197, %v196
  %v209 = vpack.c.b16 %v199, %v198
  %v210 = vpack.c.b16 %v201, %v200
  %v211 = vpack.c.b16 %v203, %v202
  %220 = vmatprep.subr.bf16.mxu0 0
  %221 = vmatpush1.bf16.msra.mxu0 %v211
  %222 = vmatprep.subr.bf16.mxu0 0
  %223 = vmatpush1.bf16.msra.mxu0 %v210
  %224 = vmatprep.subr.bf16.mxu0 0
  %225 = vmatpush1.bf16.msra.mxu0 %v209
  %226 = vmatprep.subr.bf16.mxu0 0
  %227 = vmatpush1.bf16.msra.mxu0 %v208
  %228 = vmatprep.subr.bf16.mxu0 0
  %229 = vmatpush1.bf16.msra.mxu0 %v207
  %230 = vmatprep.subr.bf16.mxu0 0
  %231 = vmatpush1.bf16.msra.mxu0 %v206
  %232 = vmatprep.subr.bf16.mxu0 0
  %233 = vmatpush1.bf16.msra.mxu0 %v205
  %234 = vmatprep.subr.bf16.mxu0 0
  %235 = vmatpush1.bf16.msra.mxu0 %v204
  %236 = vmatprep.subr.bf16.mxu0 0
  %237 = vmatpush2.bf16.msra.mxu0 0
  %238 = vmatprep.subr.bf16.mxu0 0
  %239 = vmatpush2.bf16.msra.mxu0 0
  %240 = vmatprep.subr.bf16.mxu0 0
  %241 = vmatpush2.bf16.msra.mxu0 0
  %242 = vmatprep.subr.bf16.mxu0 0
  %243 = vmatpush2.bf16.msra.mxu0 0
  %244 = vmatprep.subr.bf16.mxu0 0
  %245 = vmatpush2.bf16.msra.mxu0 0
  %246 = vmatprep.subr.bf16.mxu0 0
  %247 = vmatpush2.bf16.msra.mxu0 0
  %248 = vmatprep.subr.bf16.mxu0 0
  %249 = vmatpush2.bf16.msra.mxu0 0
  %250 = vmatprep.subr.bf16.mxu0 0
  %251 = vmatpush2.bf16.msra.mxu0 0
  %252 = vmatprep.mubr.bf16.mxu0 0
  %253 = vmatmul.mubr.bf16.gmra.mxu0 %v145
  %v254 = vpop.f32.mrf.mxu0
  %v255 = vadd.f32 %v170, %v254
  %v256 = vpop.f32.mrf.mxu0
  %v257 = vpop.f32.mrf.mxu0
  %v258 = vadd.f32 %v170, %v257
  %v259 = vpop.f32.mrf.mxu0
  %260 = vmatprep.mubr.bf16.mxu0 0
  %261 = vmatmul.mubr.bf16.gmra.mxu0 %v146
  %v262 = vpop.f32.mrf.mxu0
  %v263 = vadd.f32 %v170, %v262
  %v264 = vpop.f32.mrf.mxu0
  %v265 = vpop.f32.mrf.mxu0
  %v266 = vadd.f32 %v170, %v265
  %v267 = vpop.f32.mrf.mxu0
  %268 = vmatprep.mubr.bf16.mxu0 0
  %269 = vmatmul.mubr.bf16.gmra.mxu0 %v147
  %v270 = vpop.f32.mrf.mxu0
  %v271 = vadd.f32 %v170, %v270
  %v272 = vpop.f32.mrf.mxu0
  %v273 = vpop.f32.mrf.mxu0
  %v274 = vadd.f32 %v170, %v273
  %v275 = vpop.f32.mrf.mxu0
  %276 = vmatprep.mubr.bf16.mxu0 0
  %277 = vmatmul.mubr.bf16.gmra.mxu0 %v148
  %v278 = vpop.f32.mrf.mxu0
  %v279 = vadd.f32 %v170, %v278
  %v280 = vpop.f32.mrf.mxu0
  %v281 = vpop.f32.mrf.mxu0
  %v282 = vadd.f32 %v170, %v281
  %v283 = vpop.f32.mrf.mxu0
  %284 = vdwg.mxu0
  %v285 = vmax.f32 %v255, 0.0
  %v286 = vmax.f32 %v258, 0.0
  %v287 = vmax.f32 %v263, 0.0
  %v288 = vmax.f32 %v266, 0.0
  %v289 = vmax.f32 %v271, 0.0
  %v290 = vmax.f32 %v274, 0.0
  %v291 = vmax.f32 %v279, 0.0
  %v292 = vmax.f32 %v282, 0.0
  %v293 = vpack.c.bf16 %v286, %v285
  %v294 = vpack.c.bf16 %v288, %v287
  %v295 = vpack.c.bf16 %v290, %v289
  %v296 = vpack.c.bf16 %v292, %v291
  %v297 = vld [vmem:[%s3] sm:$0xf]
  %v298 = vld [vmem:[%s3 + $0x4] sm:$0xf]
  %v299 = vld [vmem:[%s3 + $0x8] sm:$0xf]
  %v300 = vld [vmem:[%s3 + $0xc] sm:$0xf]
  %v301 = vld [vmem:[%s3 + $0x10] sm:$0xf]
  %v302 = vld [vmem:[%s3 + $0x14] sm:$0xf]
  %v303 = vld [vmem:[%s3 + $0x18] sm:$0xf]
  %v304 = vld [vmem:[%s3 + $0x1c] sm:$0xf]
  %v305 = vld [vmem:[%s3 + $0x20] sm:$0xf]
  %v306 = vld [vmem:[%s3 + $0x24] sm:$0xf]
  %v307 = vld [vmem:[%s3 + $0x28] sm:$0xf]
  %v308 = vld [vmem:[%s3 + $0x2c] sm:$0xf]
  %v309 = vld [vmem:[%s3 + $0x30] sm:$0xf]
  %v310 = vld [vmem:[%s3 + $0x34] sm:$0xf]
  %v311 = vld [vmem:[%s3 + $0x38] sm:$0xf]
  %v312 = vld [vmem:[%s3 + $0x3c] sm:$0xf]
  %v313 = vld [vmem:[%s5 + $0x2] sm:$0x1]
  %v315 = vlaneseq
  %v316 = vshrl.u32 %v315, 7
  %v317 = vsub.s32 0, %v316
  %v318 = vrot.slane %v313, %v317
  %v336 = vunpack.c.l.b16 %v297
  %v337 = vunpack.c.l.b16 %v298
  %v338 = vunpack.c.l.b16 %v299
  %v339 = vunpack.c.l.b16 %v300
  %v340 = vunpack.c.l.b16 %v301
  %v341 = vunpack.c.l.b16 %v302
  %v342 = vunpack.c.l.b16 %v303
  %v343 = vunpack.c.l.b16 %v304
  %v344 = vunpack.c.l.b16 %v305
  %v345 = vunpack.c.l.b16 %v306
  %v346 = vunpack.c.l.b16 %v307
  %v347 = vunpack.c.l.b16 %v308
  %v348 = vunpack.c.l.b16 %v309
  %v349 = vunpack.c.l.b16 %v310
  %v350 = vunpack.c.l.b16 %v311
  %v351 = vunpack.c.l.b16 %v312
  %v352 = vpack.c.b16 %v337, %v336
  %v353 = vpack.c.b16 %v339, %v338
  %v354 = vpack.c.b16 %v341, %v340
  %v355 = vpack.c.b16 %v343, %v342
  %v356 = vpack.c.b16 %v345, %v344
  %v357 = vpack.c.b16 %v347, %v346
  %v358 = vpack.c.b16 %v349, %v348
  %v359 = vpack.c.b16 %v351, %v350
  %368 = vmatprep.subr.bf16.mxu0 0
  %369 = vmatpush1.bf16.msra.mxu0 %v359
  %370 = vmatprep.subr.bf16.mxu0 0
  %371 = vmatpush1.bf16.msra.mxu0 %v358
  %372 = vmatprep.subr.bf16.mxu0 0
  %373 = vmatpush1.bf16.msra.mxu0 %v357
  %374 = vmatprep.subr.bf16.mxu0 0
  %375 = vmatpush1.bf16.msra.mxu0 %v356
  %376 = vmatprep.subr.bf16.mxu0 0
  %377 = vmatpush1.bf16.msra.mxu0 %v355
  %378 = vmatprep.subr.bf16.mxu0 0
  %379 = vmatpush1.bf16.msra.mxu0 %v354
  %380 = vmatprep.subr.bf16.mxu0 0
  %381 = vmatpush1.bf16.msra.mxu0 %v353
  %382 = vmatprep.subr.bf16.mxu0 0
  %383 = vmatpush1.bf16.msra.mxu0 %v352
  %384 = vmatprep.subr.bf16.mxu0 0
  %385 = vmatpush2.bf16.msra.mxu0 0
  %386 = vmatprep.subr.bf16.mxu0 0
  %387 = vmatpush2.bf16.msra.mxu0 0
  %388 = vmatprep.subr.bf16.mxu0 0
  %389 = vmatpush2.bf16.msra.mxu0 0
  %390 = vmatprep.subr.bf16.mxu0 0
  %391 = vmatpush2.bf16.msra.mxu0 0
  %392 = vmatprep.subr.bf16.mxu0 0
  %393 = vmatpush2.bf16.msra.mxu0 0
  %394 = vmatprep.subr.bf16.mxu0 0
  %395 = vmatpush2.bf16.msra.mxu0 0
  %396 = vmatprep.subr.bf16.mxu0 0
  %397 = vmatpush2.bf16.msra.mxu0 0
  %398 = vmatprep.subr.bf16.mxu0 0
  %399 = vmatpush2.bf16.msra.mxu0 0
  %400 = vmatprep.mubr.bf16.mxu0 0
  %401 = vmatmul.mubr.bf16.gmra.mxu0 %v293
  %v402 = vpop.f32.mrf.mxu0
  %v403 = vadd.f32 %v318, %v402
  %v404 = vpop.f32.mrf.mxu0
  %v405 = vpop.f32.mrf.mxu0
  %v406 = vadd.f32 %v318, %v405
  %v407 = vpop.f32.mrf.mxu0
  %408 = vmatprep.mubr.bf16.mxu0 0
  %409 = vmatmul.mubr.bf16.gmra.mxu0 %v294
  %v410 = vpop.f32.mrf.mxu0
  %v411 = vadd.f32 %v318, %v410
  %v412 = vpop.f32.mrf.mxu0
  %v413 = vpop.f32.mrf.mxu0
  %v414 = vadd.f32 %v318, %v413
  %v415 = vpop.f32.mrf.mxu0
  %416 = vmatprep.mubr.bf16.mxu0 0
  %417 = vmatmul.mubr.bf16.gmra.mxu0 %v295
  %v418 = vpop.f32.mrf.mxu0
  %v419 = vadd.f32 %v318, %v418
  %v420 = vpop.f32.mrf.mxu0
  %v421 = vpop.f32.mrf.mxu0
  %v422 = vadd.f32 %v318, %v421
  %v423 = vpop.f32.mrf.mxu0
  %424 = vmatprep.mubr.bf16.mxu0 0
  %425 = vmatmul.mubr.bf16.gmra.mxu0 %v296
  %v426 = vpop.f32.mrf.mxu0
  %v427 = vadd.f32 %v318, %v426
  %v428 = vpop.f32.mrf.mxu0
  %v429 = vpop.f32.mrf.mxu0
  %v430 = vadd.f32 %v318, %v429
  %v431 = vpop.f32.mrf.mxu0
  %432 = vdwg.mxu0
  %v433 = vmax.f32 %v403, 0.0
  %v434 = vmax.f32 %v406, 0.0
  %v435 = vmax.f32 %v411, 0.0
  %v436 = vmax.f32 %v414, 0.0
  %v437 = vmax.f32 %v419, 0.0
  %v438 = vmax.f32 %v422, 0.0
  %v439 = vmax.f32 %v427, 0.0
  %v440 = vmax.f32 %v430, 0.0
  %v441 = vpack.c.bf16 %v434, %v433
  %v442 = vpack.c.bf16 %v436, %v435
  %v443 = vpack.c.bf16 %v438, %v437
  %v444 = vpack.c.bf16 %v440, %v439
  %v445 = vld [vmem:[%s4] sm:$0xf]
  %v446 = vld [vmem:[%s4 + $0x4] sm:$0xf]
  %v447 = vld [vmem:[%s4 + $0x8] sm:$0xf]
  %v448 = vld [vmem:[%s4 + $0xc] sm:$0xf]
  %v449 = vld [vmem:[%s4 + $0x10] sm:$0xf]
  %v450 = vld [vmem:[%s4 + $0x14] sm:$0xf]
  %v451 = vld [vmem:[%s4 + $0x18] sm:$0xf]
  %v452 = vld [vmem:[%s4 + $0x1c] sm:$0xf]
  %v453 = vld [vmem:[%s4 + $0x20] sm:$0xf]
  %v454 = vld [vmem:[%s4 + $0x24] sm:$0xf]
  %v455 = vld [vmem:[%s4 + $0x28] sm:$0xf]
  %v456 = vld [vmem:[%s4 + $0x2c] sm:$0xf]
  %v457 = vld [vmem:[%s4 + $0x30] sm:$0xf]
  %v458 = vld [vmem:[%s4 + $0x34] sm:$0xf]
  %v459 = vld [vmem:[%s4 + $0x38] sm:$0xf]
  %v460 = vld [vmem:[%s4 + $0x3c] sm:$0xf]
  %v461 = vld [vmem:[%s5 + $0x3] sm:$0x1]
  %v463 = vlaneseq
  %v464 = vshrl.u32 %v463, 7
  %v465 = vsub.s32 0, %v464
  %v466 = vrot.slane %v461, %v465
  %v484 = vunpack.c.l.b16 %v445
  %v485 = vunpack.c.l.b16 %v446
  %v486 = vunpack.c.l.b16 %v447
  %v487 = vunpack.c.l.b16 %v448
  %v488 = vunpack.c.l.b16 %v449
  %v489 = vunpack.c.l.b16 %v450
  %v490 = vunpack.c.l.b16 %v451
  %v491 = vunpack.c.l.b16 %v452
  %v492 = vunpack.c.l.b16 %v453
  %v493 = vunpack.c.l.b16 %v454
  %v494 = vunpack.c.l.b16 %v455
  %v495 = vunpack.c.l.b16 %v456
  %v496 = vunpack.c.l.b16 %v457
  %v497 = vunpack.c.l.b16 %v458
  %v498 = vunpack.c.l.b16 %v459
  %v499 = vunpack.c.l.b16 %v460
  %v500 = vpack.c.b16 %v485, %v484
  %v501 = vpack.c.b16 %v487, %v486
  %v502 = vpack.c.b16 %v489, %v488
  %v503 = vpack.c.b16 %v491, %v490
  %v504 = vpack.c.b16 %v493, %v492
  %v505 = vpack.c.b16 %v495, %v494
  %v506 = vpack.c.b16 %v497, %v496
  %v507 = vpack.c.b16 %v499, %v498
  %516 = vmatprep.subr.bf16.mxu0 0
  %517 = vmatpush1.bf16.msra.mxu0 %v507
  %518 = vmatprep.subr.bf16.mxu0 0
  %519 = vmatpush1.bf16.msra.mxu0 %v506
  %520 = vmatprep.subr.bf16.mxu0 0
  %521 = vmatpush1.bf16.msra.mxu0 %v505
  %522 = vmatprep.subr.bf16.mxu0 0
  %523 = vmatpush1.bf16.msra.mxu0 %v504
  %524 = vmatprep.subr.bf16.mxu0 0
  %525 = vmatpush1.bf16.msra.mxu0 %v503
  %526 = vmatprep.subr.bf16.mxu0 0
  %527 = vmatpush1.bf16.msra.mxu0 %v502
  %528 = vmatprep.subr.bf16.mxu0 0
  %529 = vmatpush1.bf16.msra.mxu0 %v501
  %530 = vmatprep.subr.bf16.mxu0 0
  %531 = vmatpush1.bf16.msra.mxu0 %v500
  %532 = vmatprep.subr.bf16.mxu0 0
  %533 = vmatpush2.bf16.msra.mxu0 0
  %534 = vmatprep.subr.bf16.mxu0 0
  %535 = vmatpush2.bf16.msra.mxu0 0
  %536 = vmatprep.subr.bf16.mxu0 0
  %537 = vmatpush2.bf16.msra.mxu0 0
  %538 = vmatprep.subr.bf16.mxu0 0
  %539 = vmatpush2.bf16.msra.mxu0 0
  %540 = vmatprep.subr.bf16.mxu0 0
  %541 = vmatpush2.bf16.msra.mxu0 0
  %542 = vmatprep.subr.bf16.mxu0 0
  %543 = vmatpush2.bf16.msra.mxu0 0
  %544 = vmatprep.subr.bf16.mxu0 0
  %545 = vmatpush2.bf16.msra.mxu0 0
  %546 = vmatprep.subr.bf16.mxu0 0
  %547 = vmatpush2.bf16.msra.mxu0 0
  %548 = vmatprep.mubr.bf16.mxu0 0
  %549 = vmatmul.mubr.bf16.gmra.mxu0 %v441
  %v550 = vpop.f32.mrf.mxu0
  %v551 = vadd.f32 %v466, %v550
  %v552 = vpop.f32.mrf.mxu0
  %v553 = vpop.f32.mrf.mxu0
  %v554 = vadd.f32 %v466, %v553
  %v555 = vpop.f32.mrf.mxu0
  %556 = vmatprep.mubr.bf16.mxu0 0
  %557 = vmatmul.mubr.bf16.gmra.mxu0 %v442
  %v558 = vpop.f32.mrf.mxu0
  %v559 = vadd.f32 %v466, %v558
  %v560 = vpop.f32.mrf.mxu0
  %v561 = vpop.f32.mrf.mxu0
  %v562 = vadd.f32 %v466, %v561
  %v563 = vpop.f32.mrf.mxu0
  %564 = vmatprep.mubr.bf16.mxu0 0
  %565 = vmatmul.mubr.bf16.gmra.mxu0 %v443
  %v566 = vpop.f32.mrf.mxu0
  %v567 = vadd.f32 %v466, %v566
  %v568 = vpop.f32.mrf.mxu0
  %v569 = vpop.f32.mrf.mxu0
  %v570 = vadd.f32 %v466, %v569
  %v571 = vpop.f32.mrf.mxu0
  %572 = vmatprep.mubr.bf16.mxu0 0
  %573 = vmatmul.mubr.bf16.gmra.mxu0 %v444
  %v574 = vpop.f32.mrf.mxu0
  %v575 = vadd.f32 %v466, %v574
  %v576 = vpop.f32.mrf.mxu0
  %v577 = vpop.f32.mrf.mxu0
  %v578 = vadd.f32 %v466, %v577
  %v579 = vpop.f32.mrf.mxu0
  %580 = vdwg.mxu0
  %v581 = vsub.f32 0.0, %v551
  %v582 = vsub.f32 0.0, %v554
  %v583 = vsub.f32 0.0, %v559
  %v584 = vsub.f32 0.0, %v562
  %v585 = vsub.f32 0.0, %v567
  %v586 = vsub.f32 0.0, %v570
  %v587 = vsub.f32 0.0, %v575
  %v588 = vsub.f32 0.0, %v578
  %v589 = vmul.f32 %v581, 1.442695
  %v590 = vpow.pop %v589
  %v591 = vmul.f32 %v582, 1.442695
  %v592 = vpow.pop %v591
  %v593 = vmul.f32 %v583, 1.442695
  %v594 = vpow.pop %v593
  %v595 = vmul.f32 %v584, 1.442695
  %v596 = vpow.pop %v595
  %v597 = vmul.f32 %v585, 1.442695
  %v598 = vpow.pop %v597
  %v599 = vmul.f32 %v586, 1.442695
  %v600 = vpow.pop %v599
  %v601 = vmul.f32 %v587, 1.442695
  %v602 = vpow.pop %v601
  %v603 = vmul.f32 %v588, 1.442695
  %v604 = vpow.pop %v603
  %v605 = vadd.f32 %v590, 1.0
  %v606 = vadd.f32 %v592, 1.0
  %v607 = vadd.f32 %v594, 1.0
  %v608 = vadd.f32 %v596, 1.0
  %v609 = vadd.f32 %v598, 1.0
  %v610 = vadd.f32 %v600, 1.0
  %v611 = vadd.f32 %v602, 1.0
  %v612 = vadd.f32 %v604, 1.0
  %v613 = vrcp.pop %v605
  %v614 = vrcp.pop %v606
  %v615 = vrcp.pop %v607
  %v616 = vrcp.pop %v608
  %v617 = vrcp.pop %v609
  %v618 = vrcp.pop %v610
  %v619 = vrcp.pop %v611
  %v620 = vrcp.pop %v612
  %621 = vst [vmem:[%s6] sm:$0xff] %v613
  %622 = vst [vmem:[%s6 + $0x8] sm:$0xff] %v614
  %623 = vst [vmem:[%s6 + $0x10] sm:$0xff] %v615
  %624 = vst [vmem:[%s6 + $0x18] sm:$0xff] %v616
  %625 = vst [vmem:[%s6 + $0x20] sm:$0xff] %v617
  %626 = vst [vmem:[%s6 + $0x28] sm:$0xff] %v618
  %627 = vst [vmem:[%s6 + $0x30] sm:$0xff] %v619
  %628 = vst [vmem:[%s6 + $0x38] sm:$0xff] %v620
  // Predicated region
  $region26: #{neural_net_forward.1} parent=0 // pred_check
    _
  $region27: #{neural_net_forward.1} parent=0 // pred_check_branch
    %630 = sbr.rel (0) target = $region29
  $region28: #{neural_net_forward.1} parent=0 // pred_region
    _
  $region29: #{neural_net_forward.1} parent=0 // pred_fallthru
    _
  // Predicated region
  $region30: #{neural_net_forward.1} parent=0 // pred_check
    _
  $region31: #{neural_net_forward.1} parent=0 // pred_check_branch
    %632 = sbr.rel (0) target = $region33
  $region32: #{neural_net_forward.1} parent=0 // pred_region
    _
  $region33: #{neural_net_forward.1} parent=0 // pred_fallthru
    _

</llo_original>
